<compile_context>
chip_gen: v6e
topology: v6e:2x2x1
jax: 0.10.0
libtpu: 0.0.40
codegen_flags: <defaults>
</compile_context>

<pallas_src>
import math

import jax
import jax.numpy as jnp
from jax.experimental import pallas as pl
from jax.experimental.pallas import tpu as pltpu


def _round_up(a: int, b: int) -> int:
    return -(-a // b) * b


def _sn_linear_kernel(inv_spec_ref, x_ref, wt_ref, b_ref, o_ref, acc_ref):
    """One (tm, tn) output tile of y = (x @ W^T) * (1/spec) + b.

    inv_spec_ref : (1, 1)   SMEM scalar, 1/spec
    x_ref        : (tm, tk) input tile (compute dtype, e.g. bf16)
    wt_ref       : (tk, tn) W^T tile (compute dtype)
    b_ref        : (1, tn)  bias tile (f32)
    o_ref        : (tm, tn) output tile
    acc_ref      : (tm, tn) f32 VMEM accumulator (persists across the K axis)
    """
    @pl.when(pl.program_id(2) == 0)
    def _init():
        acc_ref[...] = jnp.zeros_like(acc_ref)

    acc_ref[...] += jnp.dot(x_ref[...], wt_ref[...],
                            preferred_element_type=jnp.float32)

    @pl.when(pl.program_id(2) == pl.num_programs(2) - 1)
    def _finalize():
        o_ref[...] = (acc_ref[...] * inv_spec_ref[0, 0]
                      + b_ref[...]).astype(o_ref.dtype)


def _vmem_budget_bytes() -> int:
    """Per-generation usable VMEM budget for the kernel working set."""
    try:
        kind = jax.devices()[0].device_kind.lower()
    except Exception:
        kind = ""
    if ("v5" in kind) or ("v6" in kind):
        return 96 << 20          # 128 MiB physical on v5e/v6e
    return 44 << 20              # conservative: v7x has 64 MiB / TensorCore


def _largest_divisor_tile(dim: int, candidates) -> int:
    for c in candidates:
        if c <= dim and dim % c == 0:
            return c
    return dim


def _pick_tm(m: int, tile_m_max: int) -> int:
    """Largest power-of-two row tile (>=8) keeping row-padding waste small."""
    m8 = max(_round_up(m, 8), 8)
    allowed_waste = max(m // 8, 8)
    for cand in (1024, 512, 256, 128, 64, 32, 16, 8):
        if cand > tile_m_max:
            continue
        if _round_up(m8, cand) - m <= allowed_waste:
            return cand
    return 8


def _vmem_need(tm, tk, tn, in_itemsize) -> int:
    return (2 * tm * tk * in_itemsize        # x tile, double-buffered
            + 2 * tk * tn * in_itemsize      # W^T tile, double-buffered
            + 2 * tn * 4                     # bias tile (f32)
            + 2 * tm * tn * 4                # output tile (f32), double-buffered
            + tm * tn * 4                    # f32 accumulator scratch
            + (2 << 20))                     # margin


def sn_linear(x, weight, bias, u, v, *, compute_dtype=jnp.bfloat16,
              tile_m_max=512, out_dtype=None, use_pallas=None):
    """Spectral-normalized Linear forward.

    x      : (..., in_features)      float32
    weight : (out_features, in_features)
    bias   : (out_features,)
    u      : (out_features, 1)
    v      : (in_features, 1)
    returns: (..., out_features)
    """
    orig_lead = x.shape[:-1]
    N, K = weight.shape                       # out_features, in_features
    x2 = x.reshape(-1, K)
    M = x2.shape[0]
    out_dtype = x.dtype if out_dtype is None else out_dtype

    # ---- spectral norm (1 power iteration): grid-invariant -> wrapper ----
    # NOTE: like the PyTorch module, no eps in the normalization.
    W = weight.astype(jnp.float32)
    vout = W.T @ u
    vout = vout / jnp.sqrt(jnp.sum(vout * vout))
    uout = W @ v
    uout = uout / jnp.sqrt(jnp.sum(uout * uout))
    spec = jnp.sum(uout * (W @ vout))         # scalar == uout^T (W vout)
    inv_spec = (1.0 / spec).reshape(1, 1).astype(jnp.float32)

    # ---- tiny-problem fallback: padding/launch overhead dominates ----
    tiny = (K < 128 and N < 128 and M < 64)
    if use_pallas is None:
        use_pallas = not tiny
    if not use_pallas:
        y = (x2 @ W.T) * inv_spec[0, 0] + bias.astype(jnp.float32)
        return y.astype(out_dtype).reshape(*orig_lead, N)

    # ---- pad to lane-dense / MXU-friendly shapes ----
    Kp = max(_round_up(K, 128), 128)
    Np = max(_round_up(N, 128), 128)

    # K/N tiles: prefer 256-multiples (v6e/v7x MXU is 256x256) when divisible.
    tk = _largest_divisor_tile(Kp, (512, 256, 128))
    tn = _largest_divisor_tile(Np, (512, 256, 128))
    tm = _pick_tm(M, tile_m_max)

    # ---- shrink tiles until the working set fits the per-gen VMEM budget ----
    in_itemsize = jnp.dtype(compute_dtype).itemsize
    budget = _vmem_budget_bytes()
    while _vmem_need(tm, tk, tn, in_itemsize) > budget:
        if tk > 128:
            tk //= 2
        elif tn > 128:
            tn //= 2
        elif tm > 8:
            tm //= 2
        else:
            break

    Mp = _round_up(max(_round_up(M, 8), 8), tm)

    x_p = jnp.pad(x2.astype(compute_dtype), ((0, Mp - M), (0, Kp - K)))
    wt_p = jnp.pad(W.T.astype(compute_dtype), ((0, Kp - K), (0, Np - N)))
    b_p = jnp.pad(bias.astype(jnp.float32).reshape(1, N), ((0, 0), (0, Np - N)))

    grid = (Mp // tm, Np // tn, Kp // tk)

    out = pl.pallas_call(
        _sn_linear_kernel,
        out_shape=jax.ShapeDtypeStruct((Mp, Np), jnp.float32),
        grid=grid,
        in_specs=[
            pl.BlockSpec(memory_space=pltpu.MemorySpace.SMEM),   # 1/spec scalar
            pl.BlockSpec((tm, tk), lambda i, j, k: (i, k)),      # x rows
            pl.BlockSpec((tk, tn), lambda i, j, k: (k, j)),      # W^T tile
            pl.BlockSpec((1, tn), lambda i, j, k: (0, j)),       # bias tile
        ],
        out_specs=pl.BlockSpec((tm, tn), lambda i, j, k: (i, j)),
        scratch_shapes=[pltpu.VMEM((tm, tn), jnp.float32)],
        compiler_params=pltpu.CompilerParams(
            dimension_semantics=("parallel", "parallel", "arbitrary"),
            vmem_limit_bytes=int(budget),
        ),
    )(inv_spec, x_p, wt_p, b_p)

    return out[:M, :N].astype(out_dtype).reshape(*orig_lead, N)


def _reference(x, weight, bias, u, v):
    """Plain-JAX reference mirroring the PyTorch forward exactly."""
    W = weight
    vout = W.T @ u
    vout = vout / jnp.linalg.norm(vout)
    uout = W @ v
    uout = uout / jnp.linalg.norm(uout)
    spec = (uout.T @ (W @ vout))[0, 0]
    W_sn = W / spec
    return x @ W_sn.T + bias


if __name__ == "__main__":
    # SnLinear(in_features=32, out_features=32, bias=True)
    B, S = 2, 8
    in_features, out_features = 32, 32

    key = jax.random.PRNGKey(0)
    kx, kw, kb, ku, kv = jax.random.split(key, 5)

    x = jax.random.normal(kx, (B, S, in_features), dtype=jnp.float32)
    # PyTorch nn.Linear-style init scale
    bound = 1.0 / math.sqrt(in_features)
    weight = jax.random.uniform(kw, (out_features, in_features), jnp.float32,
                                -bound, bound)
    bias = jax.random.uniform(kb, (out_features,), jnp.float32, -bound, bound)
    u = jax.random.uniform(ku, (out_features, 1), jnp.float32)   # torch.rand
    v = jax.random.uniform(kv, (in_features, 1), jnp.float32)    # torch.rand

    y_ref = _reference(x, weight, bias, u, v)

    # f32 compute path: tight numerical check of the kernel math.
    y_f32 = jax.block_until_ready(
        sn_linear(x, weight, bias, u, v, compute_dtype=jnp.float32,
                  use_pallas=True))
    assert y_f32.shape == (B, S, out_features), y_f32.shape
    assert jnp.allclose(y_f32, y_ref, rtol=1e-4, atol=1e-4), \
        float(jnp.max(jnp.abs(y_f32 - y_ref)))

    # Default bf16 MXU path: looser tolerance (bf16 operand rounding).
    y_bf16 = jax.block_until_ready(
        sn_linear(x, weight, bias, u, v, use_pallas=True))
    assert y_bf16.shape == (B, S, out_features), y_bf16.shape
    assert jnp.allclose(y_bf16, y_ref, rtol=5e-2, atol=5e-2), \
        float(jnp.max(jnp.abs(y_bf16 - y_ref)))

    print("KERNEL_OK")
</pallas_src>

<mosaic_0001>
module attributes {stable_mosaic.version = 11 : i64} {
  func.func @_sn_linear_kernel(%arg0: i32, %arg1: i32, %arg2: i32, %arg3: memref<1x1xf32, #tpu.memory_space<smem>>, %arg4: memref<16x128xf32, #tpu.memory_space<vmem>>, %arg5: memref<128x128xf32, #tpu.memory_space<vmem>>, %arg6: memref<1x128xf32, #tpu.memory_space<vmem>>, %arg7: memref<16x128xf32, #tpu.memory_space<vmem>>, %arg8: memref<16x128xf32, #tpu.memory_space<vmem>>) attributes {dimension_semantics = [#tpu.dimension_semantics<parallel>, #tpu.dimension_semantics<parallel>, #tpu.dimension_semantics<arbitrary>], iteration_bounds = array<i64: 1, 1, 1>, scalar_prefetch = 0 : i64, scratch_operands = 1 : i64, tpu.core_type = #tpu.core_type<tc>, window_params = [{transform_indices = @transform_0, window_bounds = array<i64: 1, 1>}, {transform_indices = @transform_1, window_bounds = array<i64: 16, 128>}, {transform_indices = @transform_2, window_bounds = array<i64: 128, 128>}, {transform_indices = @transform_3, window_bounds = array<i64: 1, 128>}, {transform_indices = @transform_4, window_bounds = array<i64: 16, 128>}]} {
    %c0_i32 = arith.constant 0 : i32
    %0 = arith.cmpi eq, %arg2, %c0_i32 : i32
    %1 = arith.extui %0 : i1 to i32
    %c0_i32_0 = arith.constant 0 : i32
    %2 = arith.cmpi ne, %1, %c0_i32_0 : i32
    scf.if %2 {
      %cst_10 = arith.constant 0.000000e+00 : f32
      %12 = vector.broadcast %cst_10 : f32 to vector<16x128xf32>
      %c0_11 = arith.constant 0 : index
      %c0_12 = arith.constant 0 : index
      %13 = vector.load %arg8[%c0_11, %c0_12] : memref<16x128xf32, #tpu.memory_space<vmem>>, vector<16x128xf32>
      tpu.vector_store %arg8[%c0_11, %c0_12], %12 {strides = array<i32>} : memref<16x128xf32, #tpu.memory_space<vmem>>, vector<16x128xf32>,
    } else {
    }
    %c0 = arith.constant 0 : index
    %c0_1 = arith.constant 0 : index
    %3 = vector.load %arg8[%c0, %c0_1] : memref<16x128xf32, #tpu.memory_space<vmem>>, vector<16x128xf32>
    %c0_2 = arith.constant 0 : index
    %c0_3 = arith.constant 0 : index
    %4 = vector.load %arg4[%c0_2, %c0_3] : memref<16x128xf32, #tpu.memory_space<vmem>>, vector<16x128xf32>
    %c0_4 = arith.constant 0 : index
    %c0_5 = arith.constant 0 : index
    %5 = vector.load %arg5[%c0_4, %c0_5] : memref<128x128xf32, #tpu.memory_space<vmem>>, vector<128x128xf32>
    %cst = arith.constant dense<0.000000e+00> : vector<16x128xf32>
    %6 = tpu.matmul %4, %5, %cst {dimension_numbers = #tpu.dot_dimension_numbers<[1], [0], [0], [1], [0, 0, 1, 1], [], []>} : vector<16x128xf32>, vector<128x128xf32>, vector<16x128xf32> -> vector<16x128xf32>
    %7 = arith.addf %3, %6 : vector<16x128xf32>
    %c0_6 = arith.constant 0 : index
    %c0_7 = arith.constant 0 : index
    %8 = vector.load %arg8[%c0_6, %c0_7] : memref<16x128xf32, #tpu.memory_space<vmem>>, vector<16x128xf32>
    tpu.vector_store %arg8[%c0_6, %c0_7], %7 {strides = array<i32>} : memref<16x128xf32, #tpu.memory_space<vmem>>, vector<16x128xf32>,
    %c0_i32_8 = arith.constant 0 : i32
    %9 = arith.cmpi eq, %arg2, %c0_i32_8 : i32
    %10 = arith.extui %9 : i1 to i32
    %c0_i32_9 = arith.constant 0 : i32
    %11 = arith.cmpi ne, %10, %c0_i32_9 : i32
    scf.if %11 {
      %c0_10 = arith.constant 0 : index
      %c0_11 = arith.constant 0 : index
      %12 = vector.load %arg8[%c0_10, %c0_11] : memref<16x128xf32, #tpu.memory_space<vmem>>, vector<16x128xf32>
      %c0_12 = arith.constant 0 : index
      %c0_13 = arith.constant 0 : index
      %13 = memref.load %arg3[%c0_12, %c0_13] : memref<1x1xf32, #tpu.memory_space<smem>>
      %14 = vector.broadcast %13 : f32 to vector<16x128xf32>
      %15 = arith.mulf %12, %14 : vector<16x128xf32>
      %c0_14 = arith.constant 0 : index
      %c0_15 = arith.constant 0 : index
      %16 = vector.load %arg6[%c0_14, %c0_15] : memref<1x128xf32, #tpu.memory_space<vmem>>, vector<1x128xf32>
      %17 = vector.broadcast %16 : vector<1x128xf32> to vector<16x128xf32>
      %18 = arith.addf %15, %17 : vector<16x128xf32>
      %c0_16 = arith.constant 0 : index
      %c0_17 = arith.constant 0 : index
      %19 = vector.load %arg7[%c0_16, %c0_17] : memref<16x128xf32, #tpu.memory_space<vmem>>, vector<16x128xf32>
      tpu.vector_store %arg7[%c0_16, %c0_17], %18 {strides = array<i32>} : memref<16x128xf32, #tpu.memory_space<vmem>>, vector<16x128xf32>,
    } else {
    }
    return
  }
  func.func @transform_0(%arg0: i32, %arg1: i32, %arg2: i32) -> (i32, i32) {
    %c0_i32 = arith.constant 0 : i32
    %c0_i32_0 = arith.constant 0 : i32
    %c0_i32_1 = arith.constant 0 : i32
    return %c0_i32, %c0_i32_0 : i32, i32
  }
  func.func @transform_1(%arg0: i32, %arg1: i32, %arg2: i32) -> (i32, i32) {
    %c0_i32 = arith.constant 0 : i32
    return %arg0, %arg2 : i32, i32
  }
  func.func @transform_2(%arg0: i32, %arg1: i32, %arg2: i32) -> (i32, i32) {
    %c0_i32 = arith.constant 0 : i32
    return %arg2, %arg1 : i32, i32
  }
  func.func @transform_3(%arg0: i32, %arg1: i32, %arg2: i32) -> (i32, i32) {
    %c0_i32 = arith.constant 0 : i32
    %c0_i32_0 = arith.constant 0 : i32
    return %c0_i32, %arg1 : i32, i32
  }
  func.func @transform_4(%arg0: i32, %arg1: i32, %arg2: i32) -> (i32, i32) {
    %c0_i32 = arith.constant 0 : i32
    return %arg0, %arg1 : i32, i32
  }
}

</mosaic_0001>

<llo_original>
// kernel: tpu_custom_call.1
$region0: #{tpu_custom_call.1}
  #allocation0 [shape = 'u32[]', space=smem, size = 0x4, offset = 0x4, fixed_abs, tag = 'smem constant byte address 0x4 - core index']
  #allocation1 [shape = 'u32[144,128]{1,0:T(1,128)}', space=vmem, size = 0x12000, scoped, tag = 'internal scratch']
  #allocation2 [shape = 'f32[16,128]{1,0:T(8,128)}', space=vmem, size = 0x2000, scoped, tag = 'scratch operand']
  #allocation3 [shape = 'f32[1,1]{1,0:T(1,128)S(6)}', space=smem, size = 0x200, scoped, tag = 'scoped memory for tpu_custom_call.1']
  %s0 = inlined_call_operand.<no memory space> [shape: f32[1,1], index: 0, kind: input, shape index: {}]
  %s1 = inlined_call_operand.hbm [shape: f32[16,128], index: 1, kind: input, shape index: {}]
  %s2 = inlined_call_operand.hbm [shape: f32[128,128], index: 2, kind: input, shape index: {}]
  %s3 = inlined_call_operand.vmem [shape: f32[1,128], index: 3, kind: input, shape index: {}]
  %s4 = inlined_call_operand.hbm [shape: f32[16,128], index: 4, kind: output, shape index: {}]
  %s5 = sld [smem:[#allocation0]]
  $region42: #{tpu_custom_call.1} parent=0
    _
  %s7 = ssub.s32 1, %s5
  %s8 = scalar_select 0, %s7, %s5
  %9 = sst [smem:[#allocation3]] %s0
  $region1: #{tpu_custom_call.1} parent=0
    #allocation4 [shape = 'u8[8192]{0}', space=vmem, size = 0x2000, scoped, tag = 'input window, operand 1, single buffered']
    #allocation5 [shape = 's32[1]{0}', space=sflag, size = 0x4, scoped, tag = 'scoped memory for tpu_custom_call.1']
    #allocation6 [shape = 's32[1]{0}', space=sflag, size = 0x4, scoped, tag = 'scoped memory for tpu_custom_call.1']
    #allocation7 [shape = 'u8[65536]{0}', space=vmem, size = 0x10000, scoped, tag = 'input window, operand 2, single buffered']
    #allocation8 [shape = 's32[1]{0}', space=sflag, size = 0x4, scoped, tag = 'scoped memory for tpu_custom_call.1']
    #allocation9 [shape = 'u8[8192]{0}', space=vmem, size = 0x2000, scoped, tag = 'output window, operand 0, single buffered']
    %10 = vsyncpa [#allocation5], 0
    %11 = vsyncpa [#allocation8], 0
    %12 = vsyncpa [#allocation6], 0
    // Predicated region
    $region2: #{tpu_custom_call.1} parent=1 // pred_check
      _
    $region3: #{tpu_custom_call.1} parent=1 // pred_check_branch
      %14 = sbr.rel (0) target = $region5
    $region4: #{tpu_custom_call.1} parent=1 // pred_region
      _
    $region5: #{tpu_custom_call.1} parent=1 // pred_fallthru
      _
    // Predicated region
    $region6: #{tpu_custom_call.1} parent=1 // pred_check
      _
    $region7: #{tpu_custom_call.1} parent=1 // pred_check_branch
      %16 = sbr.rel (0) target = $region9
    $region8: #{tpu_custom_call.1} parent=1 // pred_region
      %s18 = ssub.s32 256, 256
      %19 = vsyncadd [#allocation5], %s18
      %s20 = sshll.u32 [#allocation4], 4
      %s21 = int_to_ptr.vmem [resolvable:$true] %s20
      %26 = dma.hbm_to_vmem [thread:$0]  %s1, 256, %s21, [#allocation5], 128, 128, 8
    $region9: #{tpu_custom_call.1} parent=1 // pred_fallthru
      _
    // Predicated region
    $region10: #{tpu_custom_call.1} parent=1 // pred_check
      _
    $region11: #{tpu_custom_call.1} parent=1 // pred_check_branch
      %28 = sbr.rel (0) target = $region13
    $region12: #{tpu_custom_call.1} parent=1 // pred_region
      %s30 = ssub.s32 2048, 2048
      %31 = vsyncadd [#allocation8], %s30
      %s32 = sshll.u32 [#allocation7], 4
      %s33 = int_to_ptr.vmem [resolvable:$true] %s32
      %38 = dma.hbm_to_vmem [thread:$0]  %s2, 2048, %s33, [#allocation8], 128, 128, 8
    $region13: #{tpu_custom_call.1} parent=1 // pred_fallthru
      _
    // Predicated region
    $region14: #{tpu_custom_call.1} parent=1 // pred_check
      _
    $region15: #{tpu_custom_call.1} parent=1 // pred_check_branch
      %40 = sbr.rel (0) target = $region17
    $region16: #{tpu_custom_call.1} parent=1 // pred_region
      _
    $region17: #{tpu_custom_call.1} parent=1 // pred_fallthru
      _
    // Predicated region
    $region18: #{tpu_custom_call.1} parent=1 // pred_check
      _
    $region19: #{tpu_custom_call.1} parent=1 // pred_check_branch
      %42 = sbr.rel (0) target = $region21
    $region20: #{tpu_custom_call.1} parent=1 // pred_region
      %43 = dma.done [#allocation5], 256
    $region21: #{tpu_custom_call.1} parent=1 // pred_fallthru
      _
    // Predicated region
    $region22: #{tpu_custom_call.1} parent=1 // pred_check
      _
    $region23: #{tpu_custom_call.1} parent=1 // pred_check_branch
      %45 = sbr.rel (0) target = $region25
    $region24: #{tpu_custom_call.1} parent=1 // pred_region
      %46 = dma.done [#allocation8], 2048
    $region25: #{tpu_custom_call.1} parent=1 // pred_fallthru
      _
    %p47 = scmp.eq.s32.totalorder 0, 0
    // Predicated region
    $region26: #{tpu_custom_call.1} parent=1 // pred_check
      %p48 = pneg %p47
    $region27: #{tpu_custom_call.1} parent=1 // pred_check_branch
      %50 = sbr.rel (%p48) target = $region29
    $region28: #{tpu_custom_call.1} parent=1 // pred_region
      %51 = vst [vmem:[#allocation2] sm:$0xff] 0.0
      %52 = vst [vmem:[#allocation2 + $0x8] sm:$0xff] 0.0
    $region29: #{tpu_custom_call.1} parent=1 // pred_fallthru
      _
    %v53 = vld [vmem:[#allocation2] sm:$0xff]
    %v54 = vld [vmem:[#allocation2 + $0x8] sm:$0xff]
    %v55 = vld [vmem:[#allocation4] sm:$0xff]
    %v56 = vld [vmem:[#allocation4 + $0x8] sm:$0xff]
    %v57 = vld [vmem:[#allocation7] sm:$0xff]
    %v58 = vld [vmem:[#allocation7 + $0x8] sm:$0xff]
    %v59 = vld [vmem:[#allocation7 + $0x10] sm:$0xff]
    %v60 = vld [vmem:[#allocation7 + $0x18] sm:$0xff]
    %v61 = vld [vmem:[#allocation7 + $0x20] sm:$0xff]
    %v62 = vld [vmem:[#allocation7 + $0x28] sm:$0xff]
    %v63 = vld [vmem:[#allocation7 + $0x30] sm:$0xff]
    %v64 = vld [vmem:[#allocation7 + $0x38] sm:$0xff]
    %v65 = vld [vmem:[#allocation7 + $0x40] sm:$0xff]
    %v66 = vld [vmem:[#allocation7 + $0x48] sm:$0xff]
    %v67 = vld [vmem:[#allocation7 + $0x50] sm:$0xff]
    %v68 = vld [vmem:[#allocation7 + $0x58] sm:$0xff]
    %v69 = vld [vmem:[#allocation7 + $0x60] sm:$0xff]
    %v70 = vld [vmem:[#allocation7 + $0x68] sm:$0xff]
    %v71 = vld [vmem:[#allocation7 + $0x70] sm:$0xff]
    %v72 = vld [vmem:[#allocation7 + $0x78] sm:$0xff]
    %73 = vmatprep.subr.mxu0 0.0
    %74 = vmatpush1.msra.mxu0 %v72
    %75 = vmatprep.subr.mxu0 0.0
    %76 = vmatpush1.msra.mxu0 %v71
    %77 = vmatprep.subr.mxu0 0.0
    %78 = vmatpush1.msra.mxu0 %v70
    %79 = vmatprep.subr.mxu0 0.0
    %80 = vmatpush1.msra.mxu0 %v69
    %81 = vmatprep.subr.mxu0 0.0
    %82 = vmatpush1.msra.mxu0 %v68
    %83 = vmatprep.subr.mxu0 0.0
    %84 = vmatpush1.msra.mxu0 %v67
    %85 = vmatprep.subr.mxu0 0.0
    %86 = vmatpush1.msra.mxu0 %v66
    %87 = vmatprep.subr.mxu0 0.0
    %88 = vmatpush1.msra.mxu0 %v65
    %89 = vmatprep.subr.mxu0 0.0
    %90 = vmatpush1.msra.mxu0 %v64
    %91 = vmatprep.subr.mxu0 0.0
    %92 = vmatpush1.msra.mxu0 %v63
    %93 = vmatprep.subr.mxu0 0.0
    %94 = vmatpush1.msra.mxu0 %v62
    %95 = vmatprep.subr.mxu0 0.0
    %96 = vmatpush1.msra.mxu0 %v61
    %97 = vmatprep.subr.mxu0 0.0
    %98 = vmatpush1.msra.mxu0 %v60
    %99 = vmatprep.subr.mxu0 0.0
    %100 = vmatpush1.msra.mxu0 %v59
    %101 = vmatprep.subr.mxu0 0.0
    %102 = vmatpush1.msra.mxu0 %v58
    %103 = vmatprep.subr.mxu0 0.0
    %104 = vmatpush1.msra.mxu0 %v57
    %105 = vmatprep.subr.mxu0 0.0
    %106 = vmatpush2.msra.mxu0 0.0
    %107 = vmatprep.subr.mxu0 0.0
    %108 = vmatpush2.msra.mxu0 0.0
    %109 = vmatprep.subr.mxu0 0.0
    %110 = vmatpush2.msra.mxu0 0.0
    %111 = vmatprep.subr.mxu0 0.0
    %112 = vmatpush2.msra.mxu0 0.0
    %113 = vmatprep.subr.mxu0 0.0
    %114 = vmatpush2.msra.mxu0 0.0
    %115 = vmatprep.subr.mxu0 0.0
    %116 = vmatpush2.msra.mxu0 0.0
    %117 = vmatprep.subr.mxu0 0.0
    %118 = vmatpush2.msra.mxu0 0.0
    %119 = vmatprep.subr.mxu0 0.0
    %120 = vmatpush2.msra.mxu0 0.0
    %121 = vmatprep.subr.mxu0 0.0
    %122 = vmatpush2.msra.mxu0 0.0
    %123 = vmatprep.subr.mxu0 0.0
    %124 = vmatpush2.msra.mxu0 0.0
    %125 = vmatprep.subr.mxu0 0.0
    %126 = vmatpush2.msra.mxu0 0.0
    %127 = vmatprep.subr.mxu0 0.0
    %128 = vmatpush2.msra.mxu0 0.0
    %129 = vmatprep.subr.mxu0 0.0
    %130 = vmatpush2.msra.mxu0 0.0
    %131 = vmatprep.subr.mxu0 0.0
    %132 = vmatpush2.msra.mxu0 0.0
    %133 = vmatprep.subr.mxu0 0.0
    %134 = vmatpush2.msra.mxu0 0.0
    %135 = vmatprep.subr.mxu0 0.0
    %136 = vmatpush2.msra.mxu0 0.0
    %137 = vmatprep.mubr.f32.mxu0 0.0
    %138 = vmatmul.mubr.f32.gmra.mxu0 %v55
    %v139 = vpop.f32.mrf.mxu0
    %v140 = vadd.f32 0.0, %v139
    %v141 = vpop.f32.mrf.mxu0
    %142 = vmatprep.mubr.f32.mxu0 0.0
    %143 = vmatmul.mubr.f32.gmra.mxu0 %v56
    %v144 = vpop.f32.mrf.mxu0
    %v145 = vadd.f32 0.0, %v144
    %v146 = vpop.f32.mrf.mxu0
    %147 = vdwg.mxu0
    %v148 = vadd.f32 %v53, %v140
    %v149 = vadd.f32 %v54, %v145
    %150 = vst [vmem:[#allocation2] sm:$0xff] %v148
    %151 = vst [vmem:[#allocation2 + $0x8] sm:$0xff] %v149
    // Predicated region
    $region30: #{tpu_custom_call.1} parent=1 // pred_check
      %p152 = pneg %p47
    $region31: #{tpu_custom_call.1} parent=1 // pred_check_branch
      %154 = sbr.rel (%p152) target = $region33
    $region32: #{tpu_custom_call.1} parent=1 // pred_region
      %v155 = vld [vmem:[#allocation2] sm:$0xff]
      %v156 = vld [vmem:[#allocation2 + $0x8] sm:$0xff]
      %s157 = sld [smem:[#allocation3]]
      %v158 = vstv %s157
      %v159 = vmul.f32 %v155, %v158
      %v160 = vmul.f32 %v156, %v158
      %v161 = vld [vmem:[%s3] sm:$0x1]
      %v163 = vlaneseq
      %v164 = vshrl.u32 %v163, 7
      %v165 = vsub.s32 0, %v164
      %v166 = vrot.slane %v161, %v165
      %v168 = vadd.f32 %v159, %v166
      %v169 = vadd.f32 %v160, %v166
      %170 = vst [vmem:[#allocation9] sm:$0xff] %v168
      %171 = vst [vmem:[#allocation9 + $0x8] sm:$0xff] %v169
    $region33: #{tpu_custom_call.1} parent=1 // pred_fallthru
      _
    // Predicated region
    $region34: #{tpu_custom_call.1} parent=1 // pred_check
      _
    $region35: #{tpu_custom_call.1} parent=1 // pred_check_branch
      %173 = sbr.rel (0) target = $region37
    $region36: #{tpu_custom_call.1} parent=1 // pred_region
      %s175 = ssub.s32 256, 256
      %176 = vsyncadd [#allocation6], %s175
      %s177 = sshll.u32 [#allocation9], 4
      %s178 = int_to_ptr.vmem [resolvable:$true] %s177
      %183 = dma.vmem_to_hbm [thread:$0]  %s178, 256, %s4, [#allocation6], 128, 128, 8
    $region37: #{tpu_custom_call.1} parent=1 // pred_fallthru
      _
    // Predicated region
    $region38: #{tpu_custom_call.1} parent=1 // pred_check
      _
    $region39: #{tpu_custom_call.1} parent=1 // pred_check_branch
      %185 = sbr.rel (0) target = $region41
    $region40: #{tpu_custom_call.1} parent=1 // pred_region
      %186 = dma.done [#allocation6], 256
    $region41: #{tpu_custom_call.1} parent=1 // pred_fallthru
      _
    %187 = vsyncpa [#allocation5], 1
    %188 = vsyncpa [#allocation8], 1
    %189 = vsyncpa [#allocation6], 1

</llo_original>
